<compile_context>
chip_gen: v5e
topology: v5e:2x2
jax: 0.10.0
libtpu: 0.0.40
codegen_flags: <defaults>
</compile_context>

<pallas_src>
import functools

import jax
import jax.numpy as jnp
import numpy as np
from jax.experimental import pallas as pl
from jax.experimental.pallas import tpu as pltpu

# Set to jnp.bfloat16 on v6e/v7x for ~2x MXU throughput (accumulation stays f32).
# Kept f32 here so the 1e-4 parity check against the f32 reference holds exactly.
MATMUL_DTYPE = jnp.float32


# ---------------------------------------------------------------------------
# Fused kernel: per-wav layer norm -> conv-as-matmul -> GELU -> linear -> mask.
# One grid step per wav; frames arrive time-folded (Tf, FOLD*K) so the output
# block (Tf, FOLD*D) is lane-dense (FOLD*D == 128).
# ---------------------------------------------------------------------------
def _fused_upstream_kernel(flen_ref, wlen_ref, frames_ref, wc_ref, w2_ref, b2_ref,
                           out_ref, *, fold, d_out):
    b = pl.program_id(0)
    fl = flen_ref[b]                          # int32: valid frame count for wav b
    wl = wlen_ref[b]                          # int32: valid sample count for wav b

    frames = frames_ref[...]                  # (Tf, fold*K) f32; pads are exact zeros
    tf = frames.shape[0]
    fd = fold * d_out                         # lane-dense output width

    # ---- fused F.layer_norm(wav, wav.shape) over un-padded samples ----------
    # Pads are exact zeros, so unmasked sums are the valid-sample sums; padded
    # samples only feed output lanes that the frame mask zeroes below.
    denom = jnp.maximum(wl, 1).astype(jnp.float32)        # guard zero-length wavs
    s = jnp.sum(jnp.sum(frames, axis=-1, keepdims=True), axis=0, keepdims=True)
    ss = jnp.sum(jnp.sum(frames * frames, axis=-1, keepdims=True),
                 axis=0, keepdims=True)
    mean = s / denom                                       # (1, 1)
    var = ss / denom - mean * mean                         # (1, 1)
    inv_std = jax.lax.rsqrt(var + 1e-5)                    # F.layer_norm eps
    normed = (frames - mean) * inv_std                     # (Tf, fold*K)

    # ---- synthetic extract_features: conv (as matmul) -> GELU -> linear -----
    conv = jnp.dot(normed.astype(MATMUL_DTYPE), wc_ref[...].astype(MATMUL_DTYPE),
                   preferred_element_type=jnp.float32)     # (Tf, fold*C)
    h = jax.nn.gelu(conv)
    x = jnp.dot(h.astype(MATMUL_DTYPE), w2_ref[...].astype(MATMUL_DTYPE),
                preferred_element_type=jnp.float32) + b2_ref[...]   # (Tf, fold*D)

    # ---- apply_padding_mask: zero frames >= fl -------------------------------
    # Output element (r, j) is flattened (frame, d) position r*fold*D + j; valid
    # frames occupy the first fl*D flattened positions -> one compare, no int div.
    r_idx = jax.lax.broadcasted_iota(jnp.int32, (tf, fd), 0)
    l_idx = jax.lax.broadcasted_iota(jnp.int32, (tf, fd), 1)
    flat_pos = r_idx * fd + l_idx
    mask = (flat_pos < fl * d_out).astype(jnp.float32)
    out_ref[...] = x * mask                               # lane-dense store


def _extract_features_fused(frames_f, frame_lens, wav_lens, wc_f, w2_f, b2_f,
                            *, fold, d_out):
    B, Tf, FK = frames_f.shape
    FC = wc_f.shape[1]
    FD = w2_f.shape[1]
    grid_spec = pltpu.PrefetchScalarGridSpec(
        num_scalar_prefetch=2,                 # frame_lens, wav_lens -> SMEM
        grid=(B,),
        in_specs=[
            pl.BlockSpec((None, Tf, FK), lambda b, fl, wl: (b, 0, 0)),
            pl.BlockSpec((FK, FC), lambda b, fl, wl: (0, 0)),   # resident weights
            pl.BlockSpec((FC, FD), lambda b, fl, wl: (0, 0)),
            pl.BlockSpec((1, FD), lambda b, fl, wl: (0, 0)),
        ],
        out_specs=pl.BlockSpec((None, Tf, FD), lambda b, fl, wl: (b, 0, 0)),
    )
    kernel = functools.partial(_fused_upstream_kernel, fold=fold, d_out=d_out)
    return pl.pallas_call(
        kernel,
        out_shape=jax.ShapeDtypeStruct((B, Tf, FD), jnp.float32),
        grid_spec=grid_spec,
        compiler_params=pltpu.CompilerParams(dimension_semantics=("parallel",)),
    )(frame_lens, wav_lens, frames_f, wc_f, w2_f, b2_f)


# ---------------------------------------------------------------------------
# Wrapper reproducing wrapped_upstream.forward
# ---------------------------------------------------------------------------
@functools.partial(jax.jit, static_argnames=("kernel_size",))
def wrapped_upstream_forward(padded_wav, wav_lengths, wc, w2, b2, *, kernel_size):
    B, Lmax = padded_wav.shape
    K = kernel_size
    C = wc.shape[1]
    D = w2.shape[1]
    T = Lmax // K

    # padding mask (printed, not returned, in the torch module) - semantic parity only
    wav_padding_mask = ~(jnp.arange(Lmax)[None, :] < wav_lengths[:, None])
    del wav_padding_mask

    # lane-dense fold factor: pack `fold` consecutive frames per kernel row so the
    # output block's last dim is a full 128-lane width.
    fold = 128 // D if (D < 128 and 128 % D == 0 and T % max(1, 128 // D) == 0) else 1
    Tf = T // fold

    # framing (+ fold): free row-major reshape of the zero-padded wav.
    # (A partial final frame is dropped, matching frame_lens = len // K below.)
    frames_f = padded_wav[:, : T * K].reshape(B, Tf, fold * K)

    # block-diagonal folded weights (tiny; built once per trace). Off-diagonal
    # zeros keep each D-wide lane group depending only on its own frame.
    eye = jnp.eye(fold, dtype=wc.dtype)
    wc_f = jnp.einsum("kc,fg->fkgc", wc, eye).reshape(fold * K, fold * C)
    w2_f = jnp.einsum("cd,fg->fcgd", w2, eye).reshape(fold * C, fold * D)
    b2_f = jnp.tile(b2.reshape(1, D), (1, fold))

    frame_lens = (wav_lengths // K).astype(jnp.int32)
    wav_lens = wav_lengths.astype(jnp.int32)

    out_f = _extract_features_fused(frames_f, frame_lens, wav_lens,
                                    wc_f, w2_f, b2_f, fold=fold, d_out=D)
    return out_f.reshape(B, T, D)              # free row-major un-fold


# ---------------------------------------------------------------------------
# Pure-JAX reference (module semantics) for the parity check
# ---------------------------------------------------------------------------
def _reference_forward(padded_wav, wav_lengths, wc, w2, b2, kernel_size):
    B, Lmax = padded_wav.shape
    pos = jnp.arange(Lmax)[None, :]
    mask = (pos < wav_lengths[:, None]).astype(jnp.float32)
    lens = wav_lengths.astype(jnp.float32)[:, None]
    mean = jnp.sum(padded_wav * mask, axis=-1, keepdims=True) / lens
    diff = (padded_wav - mean) * mask
    var = jnp.sum(diff * diff, axis=-1, keepdims=True) / lens
    normed = diff * jax.lax.rsqrt(var + 1e-5)
    T = Lmax // kernel_size
    frames = normed[:, : T * kernel_size].reshape(B, T, kernel_size)
    x = jax.nn.gelu(jnp.einsum("btk,kc->btc", frames, wc))
    x = jnp.einsum("btc,cd->btd", x, w2) + b2[None]
    flens = wav_lengths // kernel_size
    fmask = (jnp.arange(T)[None, :, None] < flens[:, None, None]).astype(jnp.float32)
    return x * fmask


if __name__ == "__main__":
    # small, alignment-friendly shapes
    B = 2
    L_MAX = 2048
    K = 16            # conv kernel = stride (non-overlapping)
    C = 128           # feature-extractor channels
    D = 64            # output feature dim (results['x'] hidden size)

    key = jax.random.PRNGKey(0)
    k_wav, k_wc, k_w2, k_b2 = jax.random.split(key, 4)

    # variable-length wavs, padded with zeros (pad_sequence, batch_first=True)
    wav_lengths = jnp.array([2048, 1500], dtype=jnp.int32)   # second wav: partial frame
    raw = jax.random.normal(k_wav, (B, L_MAX), dtype=jnp.float32)
    valid = (jnp.arange(L_MAX)[None, :] < wav_lengths[:, None]).astype(jnp.float32)
    padded_wav = raw * valid

    # deterministic synthetic upstream parameters (frozen feature extractor + proj)
    wc = jax.random.normal(k_wc, (K, C), dtype=jnp.float32) / np.sqrt(K)
    w2 = jax.random.normal(k_w2, (C, D), dtype=jnp.float32) / np.sqrt(C)
    b2 = 0.1 * jax.random.normal(k_b2, (1, D), dtype=jnp.float32)

    out = wrapped_upstream_forward(padded_wav, wav_lengths, wc, w2, b2, kernel_size=K)
    out = jax.block_until_ready(out)

    ref = _reference_forward(padded_wav, wav_lengths, wc, w2, b2, K)
    np.testing.assert_allclose(np.asarray(out), np.asarray(ref), rtol=1e-4, atol=1e-4)

    assert out.shape == (B, L_MAX // K, D)
    print("KERNEL_OK")
</pallas_src>

<mosaic_0001>
module attributes {stable_mosaic.version = 11 : i64} {
  func.func @_fused_upstream_kernel(%arg0: i32, %arg1: memref<2xi32, #tpu.memory_space<smem>>, %arg2: memref<2xi32, #tpu.memory_space<smem>>, %arg3: memref<1x64x32xf32, #tpu.memory_space<vmem>>, %arg4: memref<32x256xf32, #tpu.memory_space<vmem>>, %arg5: memref<256x128xf32, #tpu.memory_space<vmem>>, %arg6: memref<1x128xf32, #tpu.memory_space<vmem>>, %arg7: memref<1x64x128xf32, #tpu.memory_space<vmem>>) attributes {dimension_semantics = [#tpu.dimension_semantics<parallel>], iteration_bounds = array<i64: 2>, scalar_prefetch = 2 : i64, scratch_operands = 0 : i64, tpu.core_type = #tpu.core_type<tc>, window_params = [{transform_indices = @transform_0, window_bounds = array<i64: 1, 64, 32>}, {pipeline_mode = #tpu.pipeline_mode<synchronous>, transform_indices = @transform_1, window_bounds = array<i64: 32, 256>}, {pipeline_mode = #tpu.pipeline_mode<synchronous>, transform_indices = @transform_2, window_bounds = array<i64: 256, 128>}, {pipeline_mode = #tpu.pipeline_mode<synchronous>, transform_indices = @transform_3, window_bounds = array<i64: 1, 128>}, {transform_indices = @transform_4, window_bounds = array<i64: 1, 64, 128>}]} {
    %0 = arith.index_cast %arg0 : i32 to index
    %1 = memref.load %arg1[%0] : memref<2xi32, #tpu.memory_space<smem>>
    %2 = arith.index_cast %arg0 : i32 to index
    %3 = memref.load %arg2[%2] : memref<2xi32, #tpu.memory_space<smem>>
    %c0 = arith.constant 0 : index
    %c0_0 = arith.constant 0 : index
    %c0_1 = arith.constant 0 : index
    %4 = vector.load %arg3[%c0, %c0_0, %c0_1] : memref<1x64x32xf32, #tpu.memory_space<vmem>>, vector<1x64x32xf32>
    %5 = vector.shape_cast %4 : vector<1x64x32xf32> to vector<64x32xf32>
    %c1_i32 = arith.constant 1 : i32
    %6 = arith.maxsi %3, %c1_i32 : i32
    %7 = arith.sitofp %6 : i32 to f32
    %cst = arith.constant dense<0.000000e+00> : vector<64xf32>
    %8 = vector.multi_reduction <add>, %5, %cst [1] : vector<64x32xf32> to vector<64xf32>
    %9 = vector.shape_cast %8 : vector<64xf32> to vector<64x1xf32>
    %cst_2 = arith.constant dense<0.000000e+00> : vector<1xf32>
    %10 = vector.multi_reduction <add>, %9, %cst_2 [0] : vector<64x1xf32> to vector<1xf32>
    %11 = vector.shape_cast %10 : vector<1xf32> to vector<1x1xf32>
    %12 = arith.mulf %5, %5 : vector<64x32xf32>
    %cst_3 = arith.constant dense<0.000000e+00> : vector<64xf32>
    %13 = vector.multi_reduction <add>, %12, %cst_3 [1] : vector<64x32xf32> to vector<64xf32>
    %14 = vector.shape_cast %13 : vector<64xf32> to vector<64x1xf32>
    %cst_4 = arith.constant dense<0.000000e+00> : vector<1xf32>
    %15 = vector.multi_reduction <add>, %14, %cst_4 [0] : vector<64x1xf32> to vector<1xf32>
    %16 = vector.shape_cast %15 : vector<1xf32> to vector<1x1xf32>
    %17 = vector.broadcast %7 : f32 to vector<1x1xf32>
    %18 = arith.divf %11, %17 : vector<1x1xf32>
    %19 = vector.broadcast %7 : f32 to vector<1x1xf32>
    %20 = arith.divf %16, %19 : vector<1x1xf32>
    %21 = arith.mulf %18, %18 : vector<1x1xf32>
    %22 = arith.subf %20, %21 : vector<1x1xf32>
    %cst_5 = arith.constant 9.99999974E-6 : f32
    %23 = vector.broadcast %cst_5 : f32 to vector<1x1xf32>
    %24 = arith.addf %22, %23 : vector<1x1xf32>
    %25 = math.rsqrt %24 : vector<1x1xf32>
    %26 = vector.broadcast %18 : vector<1x1xf32> to vector<64x32xf32>
    %27 = arith.subf %5, %26 : vector<64x32xf32>
    %28 = vector.broadcast %25 : vector<1x1xf32> to vector<64x32xf32>
    %29 = arith.mulf %27, %28 : vector<64x32xf32>
    %c0_6 = arith.constant 0 : index
    %c0_7 = arith.constant 0 : index
    %30 = vector.load %arg4[%c0_6, %c0_7] : memref<32x256xf32, #tpu.memory_space<vmem>>, vector<32x256xf32>
    %cst_8 = arith.constant dense<0.000000e+00> : vector<64x256xf32>
    %31 = tpu.matmul %29, %30, %cst_8 {dimension_numbers = #tpu.dot_dimension_numbers<[1], [0], [0], [1], [0, 0, 1, 1], [], []>} : vector<64x32xf32>, vector<32x256xf32>, vector<64x256xf32> -> vector<64x256xf32>
    %32 = arith.mulf %31, %31 : vector<64x256xf32>
    %33 = arith.mulf %31, %32 : vector<64x256xf32>
    %cst_9 = arith.constant 4.471500e-02 : f32
    %34 = vector.broadcast %cst_9 : f32 to vector<64x256xf32>
    %35 = arith.mulf %34, %33 : vector<64x256xf32>
    %36 = arith.addf %31, %35 : vector<64x256xf32>
    %cst_10 = arith.constant 0.797884583 : f32
    %37 = vector.broadcast %cst_10 : f32 to vector<64x256xf32>
    %38 = arith.mulf %37, %36 : vector<64x256xf32>
    %39 = math.tanh %38 : vector<64x256xf32>
    %cst_11 = arith.constant 1.000000e+00 : f32
    %40 = vector.broadcast %cst_11 : f32 to vector<64x256xf32>
    %41 = arith.addf %40, %39 : vector<64x256xf32>
    %cst_12 = arith.constant 5.000000e-01 : f32
    %42 = vector.broadcast %cst_12 : f32 to vector<64x256xf32>
    %43 = arith.mulf %42, %41 : vector<64x256xf32>
    %44 = arith.mulf %31, %43 : vector<64x256xf32>
    %c0_13 = arith.constant 0 : index
    %c0_14 = arith.constant 0 : index
    %45 = vector.load %arg5[%c0_13, %c0_14] : memref<256x128xf32, #tpu.memory_space<vmem>>, vector<256x128xf32>
    %cst_15 = arith.constant dense<0.000000e+00> : vector<64x128xf32>
    %46 = tpu.matmul %44, %45, %cst_15 {dimension_numbers = #tpu.dot_dimension_numbers<[1], [0], [0], [1], [0, 0, 1, 1], [], []>} : vector<64x256xf32>, vector<256x128xf32>, vector<64x128xf32> -> vector<64x128xf32>
    %c0_16 = arith.constant 0 : index
    %c0_17 = arith.constant 0 : index
    %47 = vector.load %arg6[%c0_16, %c0_17] : memref<1x128xf32, #tpu.memory_space<vmem>>, vector<1x128xf32>
    %48 = vector.broadcast %47 : vector<1x128xf32> to vector<64x128xf32>
    %49 = arith.addf %46, %48 : vector<64x128xf32>
    %50 = tpu.iota {dimensions = array<i32: 0>} : vector<64x128xi32>
    %51 = tpu.iota {dimensions = array<i32: 1>} : vector<64x128xi32>
    %c128_i32 = arith.constant 128 : i32
    %52 = vector.broadcast %c128_i32 : i32 to vector<64x128xi32>
    %53 = arith.muli %50, %52 : vector<64x128xi32>
    %54 = arith.addi %53, %51 : vector<64x128xi32>
    %c64_i32 = arith.constant 64 : i32
    %55 = arith.muli %1, %c64_i32 : i32
    %56 = vector.broadcast %55 : i32 to vector<64x128xi32>
    %57 = arith.cmpi slt, %54, %56 : vector<64x128xi32>
    %58 = arith.extui %57 : vector<64x128xi1> to vector<64x128xi32>
    %59 = arith.sitofp %58 : vector<64x128xi32> to vector<64x128xf32>
    %60 = arith.mulf %49, %59 : vector<64x128xf32>
    %c0_18 = arith.constant 0 : index
    %c0_19 = arith.constant 0 : index
    %c0_20 = arith.constant 0 : index
    %61 = vector.load %arg7[%c0_18, %c0_19, %c0_20] : memref<1x64x128xf32, #tpu.memory_space<vmem>>, vector<1x64x128xf32>
    %62 = vector.shape_cast %61 : vector<1x64x128xf32> to vector<64x128xf32>
    %63 = vector.shape_cast %60 : vector<64x128xf32> to vector<1x64x128xf32>
    tpu.vector_store %arg7[%c0_18, %c0_19, %c0_20], %63 {strides = array<i32>} : memref<1x64x128xf32, #tpu.memory_space<vmem>>, vector<1x64x128xf32>,
    return
  }
  func.func @transform_0(%arg0: i32, %arg1: memref<2xi32, #tpu.memory_space<smem>>, %arg2: memref<2xi32, #tpu.memory_space<smem>>) -> (i32, i32, i32) {
    %c0_i32 = arith.constant 0 : i32
    %c0_i32_0 = arith.constant 0 : i32
    %c0_i32_1 = arith.constant 0 : i32
    return %arg0, %c0_i32, %c0_i32_0 : i32, i32, i32
  }
  func.func @transform_1(%arg0: i32, %arg1: memref<2xi32, #tpu.memory_space<smem>>, %arg2: memref<2xi32, #tpu.memory_space<smem>>) -> (i32, i32) {
    %c0_i32 = arith.constant 0 : i32
    %c0_i32_0 = arith.constant 0 : i32
    %c0_i32_1 = arith.constant 0 : i32
    return %c0_i32, %c0_i32_0 : i32, i32
  }
  func.func @transform_2(%arg0: i32, %arg1: memref<2xi32, #tpu.memory_space<smem>>, %arg2: memref<2xi32, #tpu.memory_space<smem>>) -> (i32, i32) {
    %c0_i32 = arith.constant 0 : i32
    %c0_i32_0 = arith.constant 0 : i32
    %c0_i32_1 = arith.constant 0 : i32
    return %c0_i32, %c0_i32_0 : i32, i32
  }
  func.func @transform_3(%arg0: i32, %arg1: memref<2xi32, #tpu.memory_space<smem>>, %arg2: memref<2xi32, #tpu.memory_space<smem>>) -> (i32, i32) {
    %c0_i32 = arith.constant 0 : i32
    %c0_i32_0 = arith.constant 0 : i32
    %c0_i32_1 = arith.constant 0 : i32
    return %c0_i32, %c0_i32_0 : i32, i32
  }
  func.func @transform_4(%arg0: i32, %arg1: memref<2xi32, #tpu.memory_space<smem>>, %arg2: memref<2xi32, #tpu.memory_space<smem>>) -> (i32, i32, i32) {
    %c0_i32 = arith.constant 0 : i32
    %c0_i32_0 = arith.constant 0 : i32
    %c0_i32_1 = arith.constant 0 : i32
    return %arg0, %c0_i32, %c0_i32_0 : i32, i32, i32
  }
}

</mosaic_0001>

<llo_original>
// kernel: wrapped_upstream_forward.1
$region0: #{wrapped_upstream_forward.1}
  #allocation0 [shape = 'u32[]', space=smem, size = 0x4, offset = 0x4, fixed_abs, tag = 'smem constant byte address 0x4 - core index']
  #allocation1 [shape = 'u32[72,128]{1,0:T(1,128)}', space=vmem, size = 0x9000, scoped, tag = 'internal scratch']
  #allocation2 [shape = 's32[1]{0}', space=sflag, size = 0x4, scoped, tag = 'scoped memory for wrapped_upstream_forward.1']
  #allocation3 [shape = 'u8[512]{0}', space=smem, size = 0x200, scoped, tag = 'prefetched SMEM operand 0']
  #allocation4 [shape = 'u8[512]{0}', space=smem, size = 0x200, scoped, tag = 'prefetched SMEM operand 1']
  %s0 = inlined_call_operand.vmem [shape: s32[2], index: 0, kind: input, shape index: {}]
  %s1 = inlined_call_operand.vmem [shape: s32[2], index: 1, kind: input, shape index: {}]
  %s2 = inlined_call_operand.vmem [shape: f32[2,64,32], index: 2, kind: input, shape index: {}]
  %s3 = inlined_call_operand.vmem [shape: f32[32,256], index: 3, kind: input, shape index: {}]
  %s4 = inlined_call_operand.vmem [shape: f32[256,128], index: 4, kind: input, shape index: {}]
  %s5 = inlined_call_operand.vmem [shape: f32[1,128], index: 5, kind: input, shape index: {}]
  %s6 = inlined_call_operand.vmem [shape: f32[2,64,128], index: 6, kind: output, shape index: {}]
  %s7 = sld [smem:[#allocation0]]
  $region49: #{wrapped_upstream_forward.1} parent=0
    _
  %s9 = ssub.s32 1, %s7
  %s10 = scalar_select 0, %s9, %s7
  %s12 = sshll.u32 %s0, 4
  %s13 = int_to_ptr.vmem [resolvable:$true] %s12
  %15 = dma.vmem_to_smem %s13, 16, [#allocation3], [#allocation2]
  %s17 = sshll.u32 %s1, 4
  %s18 = int_to_ptr.vmem [resolvable:$true] %s17
  %20 = dma.vmem_to_smem %s18, 16, [#allocation4], [#allocation2]
  %22 = dma.done [#allocation2], 32
  %23 = sfence
  loop: start=0, step=1, limit=4
  $region2: #{wrapped_upstream_forward.1} parent=0 // loop_pre_header
    _
  $region3: #{wrapped_upstream_forward.1} parent=0 // loop_header
    %s25 = sphi 0, %s29
    %p26 = scmp.ge.s32.totalorder %s25, 4
    %s35 = sphi 0, %s37
    %s38 = sphi 0, %s35
    %s39 = sphi 0, %s38
    %s55 = sphi 0, %s39
    %s59 = sphi 0, %s59
    %s61 = sphi 0, %s59
    %s62 = sphi 0, %s61
    %s76 = sphi 0, %s62
    %s80 = sphi 0, %s80
    %s82 = sphi 0, %s80
    %s83 = sphi 0, %s82
    %s97 = sphi 0, %s83
    %s101 = sphi 0, %s101
    %s103 = sphi 0, %s101
    %s104 = sphi 0, %s103
    %s118 = sphi 0, %s104
    %s124 = sphi 0, %s126
    %s127 = sphi 0, %s124
    %s128 = sphi 0, %s127
    %s144 = sphi 0, %s128
  $region4: #{wrapped_upstream_forward.1} parent=0 // loop_header_branch
    %28 = sbr.rel (%p26) target = $region8
  $region5: #{wrapped_upstream_forward.1} parent=0 // loop_body
    %s30 = ssub.s32 %s25, 1
    %s31 = ssub.s32 %s25, 2
    %s32 = sadd.s32 %s25, 1
    %s33 = ssub.s32 %s25, %s32
    %p34 = scmp.eq.s32.totalorder %s33, 0
    %s36 = sadd.s32 %s35, 1
    %s37 = scalar_select %p34, %s35, %s36
    %p40 = pneg %p34
    %p41 = scmp.eq.s32.totalorder %s25, 1
    %p42 = por %p40, %p41
    %p43 = scmp.ne.s32.totalorder %s35, %s38
    %p44 = scmp.eq.s32.totalorder %s25, 0
    %p45 = por %p43, %p44
    %p46 = scmp.ne.s32.totalorder %s35, %s38
    %p47 = scmp.eq.s32.totalorder %s30, 1
    %p48 = por %p46, %p47
    %p49 = scmp.ne.s32.totalorder %s38, %s39
    %p50 = scmp.eq.s32.totalorder %s30, 0
    %p51 = por %p49, %p50
    %p52 = scmp.ne.s32.totalorder %s38, %s39
    %p53 = scmp.eq.s32.totalorder %s31, 1
    %p54 = por %p52, %p53
    %p56 = scmp.ne.s32.totalorder %s39, %s55
    %p57 = scmp.eq.s32.totalorder %s31, 0
    %p58 = por %p56, %p57
    %s60 = sadd.s32 %s59, 1
    %p63 = scmp.eq.s32.totalorder %s25, 1
    %p64 = scmp.ne.s32.totalorder %s59, %s61
    %p65 = scmp.eq.s32.totalorder %s25, 0
    %p66 = por %p64, %p65
    %p67 = scmp.ne.s32.totalorder %s59, %s61
    %p68 = scmp.eq.s32.totalorder %s30, 1
    %p69 = por %p67, %p68
    %p70 = scmp.ne.s32.totalorder %s61, %s62
    %p71 = scmp.eq.s32.totalorder %s30, 0
    %p72 = por %p70, %p71
    %p73 = scmp.ne.s32.totalorder %s61, %s62
    %p74 = scmp.eq.s32.totalorder %s31, 1
    %p75 = por %p73, %p74
    %p77 = scmp.ne.s32.totalorder %s62, %s76
    %p78 = scmp.eq.s32.totalorder %s31, 0
    %p79 = por %p77, %p78
    %s81 = sadd.s32 %s80, 1
    %p84 = scmp.eq.s32.totalorder %s25, 1
    %p85 = scmp.ne.s32.totalorder %s80, %s82
    %p86 = scmp.eq.s32.totalorder %s25, 0
    %p87 = por %p85, %p86
    %p88 = scmp.ne.s32.totalorder %s80, %s82
    %p89 = scmp.eq.s32.totalorder %s30, 1
    %p90 = por %p88, %p89
    %p91 = scmp.ne.s32.totalorder %s82, %s83
    %p92 = scmp.eq.s32.totalorder %s30, 0
    %p93 = por %p91, %p92
    %p94 = scmp.ne.s32.totalorder %s82, %s83
    %p95 = scmp.eq.s32.totalorder %s31, 1
    %p96 = por %p94, %p95
    %p98 = scmp.ne.s32.totalorder %s83, %s97
    %p99 = scmp.eq.s32.totalorder %s31, 0
    %p100 = por %p98, %p99
    %s102 = sadd.s32 %s101, 1
    %p105 = scmp.eq.s32.totalorder %s25, 1
    %p106 = scmp.ne.s32.totalorder %s101, %s103
    %p107 = scmp.eq.s32.totalorder %s25, 0
    %p108 = por %p106, %p107
    %p109 = scmp.ne.s32.totalorder %s101, %s103
    %p110 = scmp.eq.s32.totalorder %s30, 1
    %p111 = por %p109, %p110
    %p112 = scmp.ne.s32.totalorder %s103, %s104
    %p113 = scmp.eq.s32.totalorder %s30, 0
    %p114 = por %p112, %p113
    %p115 = scmp.ne.s32.totalorder %s103, %s104
    %p116 = scmp.eq.s32.totalorder %s31, 1
    %p117 = por %p115, %p116
    %p119 = scmp.ne.s32.totalorder %s104, %s118
    %p120 = scmp.eq.s32.totalorder %s31, 0
    %p121 = por %p119, %p120
    %s122 = ssub.s32 %s25, %s32
    %p123 = scmp.eq.s32.totalorder %s122, 0
    %s125 = sadd.s32 %s124, 1
    %s126 = scalar_select %p123, %s124, %s125
    %p129 = pneg %p123
    %p130 = scmp.eq.s32.totalorder %s25, 1
    %p131 = por %p129, %p130
    %p132 = scmp.ne.s32.totalorder %s124, %s127
    %p133 = scmp.eq.s32.totalorder %s25, 0
    %p134 = por %p132, %p133
    %p135 = scmp.ne.s32.totalorder %s124, %s127
    %p136 = scmp.eq.s32.totalorder %s30, 1
    %p137 = por %p135, %p136
    %p138 = scmp.ne.s32.totalorder %s127, %s128
    %p139 = scmp.eq.s32.totalorder %s30, 0
    %p140 = por %p138, %p139
    %p141 = scmp.ne.s32.totalorder %s127, %s128
    %p142 = scmp.eq.s32.totalorder %s31, 1
    %p143 = por %p141, %p142
    %p145 = scmp.ne.s32.totalorder %s128, %s144
    %p146 = scmp.eq.s32.totalorder %s31, 0
    %p147 = por %p145, %p146
    %p148 = scmp.le.s32.totalorder 1, %s25
    %p149 = scmp.lt.s32.totalorder %s25, 3
    %p150 = pnand %p148, %p149
    %p151 = pneg %p150
    // Predicated region
    $region9: #{wrapped_upstream_forward.1} parent=5 // pred_check
      _
    $region10: #{wrapped_upstream_forward.1} parent=5 // pred_check_branch
      %153 = sbr.rel (%p150) target = $region12
    $region11: #{wrapped_upstream_forward.1} parent=5 // pred_region
      %s154 = ssub.s32 %s25, 1
      // Predicated region
      $region13: #{wrapped_upstream_forward.1} parent=11 // pred_check
        %p155 = pneg %p72
      $region14: #{wrapped_upstream_forward.1} parent=11 // pred_check_branch
        %157 = sbr.rel (%p155) target = $region16
      $region15: #{wrapped_upstream_forward.1} parent=11 // pred_region
        _
      $region16: #{wrapped_upstream_forward.1} parent=11 // pred_fallthru
        _
      // Predicated region
      $region17: #{wrapped_upstream_forward.1} parent=11 // pred_check
        %p158 = pneg %p93
      $region18: #{wrapped_upstream_forward.1} parent=11 // pred_check_branch
        %160 = sbr.rel (%p158) target = $region20
      $region19: #{wrapped_upstream_forward.1} parent=11 // pred_region
        _
      $region20: #{wrapped_upstream_forward.1} parent=11 // pred_fallthru
        _
      // Predicated region
      $region21: #{wrapped_upstream_forward.1} parent=11 // pred_check
        %p161 = pneg %p114
      $region22: #{wrapped_upstream_forward.1} parent=11 // pred_check_branch
        %163 = sbr.rel (%p161) target = $region24
      $region23: #{wrapped_upstream_forward.1} parent=11 // pred_region
        _
      $region24: #{wrapped_upstream_forward.1} parent=11 // pred_fallthru
        _
    $region12: #{wrapped_upstream_forward.1} parent=5 // pred_fallthru
      _
    %p164 = scmp.lt.s32.totalorder %s25, 2
    // Predicated region
    $region25: #{wrapped_upstream_forward.1} parent=5 // pred_check
      %p165 = pneg %p164
    $region26: #{wrapped_upstream_forward.1} parent=5 // pred_check_branch
      %167 = sbr.rel (%p165) target = $region28
    $region27: #{wrapped_upstream_forward.1} parent=5 // pred_region
      // Predicated region
      $region29: #{wrapped_upstream_forward.1} parent=27 // pred_check
        %p168 = pneg %p45
      $region30: #{wrapped_upstream_forward.1} parent=27 // pred_check_branch
        %170 = sbr.rel (%p168) target = $region32
      $region31: #{wrapped_upstream_forward.1} parent=27 // pred_region
        %p171 = scmp.lt.s32.totalorder %s25, 1
        %s172 = scalar_select %p171, %s25, 1
        %s173 = smul.addr %s172, 8
        %s174 = smul.addr %s173, 8
        %s175 = scalar_lea.vmem %s2, %s174
      $region32: #{wrapped_upstream_forward.1} parent=27 // pred_fallthru
        _
    $region28: #{wrapped_upstream_forward.1} parent=5 // pred_fallthru
      _
    %p176 = scmp.le.s32.totalorder 1, %s25
    %p177 = scmp.lt.s32.totalorder %s25, 3
    %p178 = pnand %p176, %p177
    %p179 = pneg %p178
    // Predicated region
    $region33: #{wrapped_upstream_forward.1} parent=5 // pred_check
      _
    $region34: #{wrapped_upstream_forward.1} parent=5 // pred_check_branch
      %181 = sbr.rel (%p178) target = $region36
    $region35: #{wrapped_upstream_forward.1} parent=5 // pred_region
      %s182 = ssub.s32 %s25, 1
      %p183 = scmp.lt.s32.totalorder %s30, 1
      %s184 = scalar_select %p183, %s30, 1
      %s185 = smul.addr %s184, 8
      %s186 = smul.addr %s185, 8
      %s187 = scalar_lea.vmem %s2, %s186
      %p188 = pneg %p51
      %p189 = pneg %p48
      %p190 = pneg %p72
      %p191 = pneg %p69
      %p192 = pneg %p93
      %p193 = pneg %p90
      %p194 = pneg %p114
      %p195 = pneg %p111
      %p196 = pneg %p140
      %p197 = pneg %p137
      %p198 = scmp.lt.s32.totalorder %s30, 1
      %s199 = scalar_select %p198, %s30, 1
      %s200 = smul.addr %s199, 8
      %s201 = smul.addr %s200, 8
      %s202 = scalar_lea.vmem %s6, %s201
      %p203 = scmp.lt.s32.totalorder %s30, 1
      %s204 = scalar_select %p203, %s30, 1
      %s205 = smul.addr %s204, 8
      %s206 = smul.addr %s205, 8
      %s207 = scalar_lea.vmem %s2, %s206
      %p208 = scmp.lt.s32.totalorder %s30, 1
      %s209 = scalar_select %p208, %s30, 1
      %s210 = smul.addr %s209, 8
      %s211 = smul.addr %s210, 8
      %s212 = scalar_lea.vmem %s6, %s211
      %s213 = sld [smem:[#allocation3 + %s30]]
      %s214 = sld [smem:[#allocation4 + %s30]]
      %v215 = vld [vmem:[%s207] sm:$0xff]
      %v216 = vld [vmem:[%s207 + $0x8] sm:$0xff]
      %v217 = vld [vmem:[%s207 + $0x10] sm:$0xff]
      %v218 = vld [vmem:[%s207 + $0x18] sm:$0xff]
      %v219 = vld [vmem:[%s207 + $0x20] sm:$0xff]
      %v220 = vld [vmem:[%s207 + $0x28] sm:$0xff]
      %v221 = vld [vmem:[%s207 + $0x30] sm:$0xff]
      %v222 = vld [vmem:[%s207 + $0x38] sm:$0xff]
      %p223 = scmp.gt.s32.totalorder %s214, 1
      %s224 = scalar_select %p223, %s214, 1
      %s225 = scvt.s32.f32 %s224
      %vm226 = vcmask 261120
      %v227 = vsel %vm226, %v215, 0.0
      %228 = vadd.xlane.f32.xlu0 %v227
      %v229 = vpop.xlane.xlu0 %228
      %v230 = vsel %vm226, %v216, 0.0
      %231 = vadd.xlane.f32.xlu0 %v230
      %v232 = vpop.xlane.xlu0 %231
      %v233 = vsel %vm226, %v217, 0.0
      %234 = vadd.xlane.f32.xlu0 %v233
      %v235 = vpop.xlane.xlu0 %234
      %v236 = vsel %vm226, %v218, 0.0
      %237 = vadd.xlane.f32.xlu0 %v236
      %v238 = vpop.xlane.xlu0 %237
      %v239 = vsel %vm226, %v219, 0.0
      %240 = vadd.xlane.f32.xlu0 %v239
      %v241 = vpop.xlane.xlu0 %240
      %v242 = vsel %vm226, %v220, 0.0
      %243 = vadd.xlane.f32.xlu0 %v242
      %v244 = vpop.xlane.xlu0 %243
      %v245 = vsel %vm226, %v221, 0.0
      %246 = vadd.xlane.f32.xlu0 %v245
      %v247 = vpop.xlane.xlu0 %246
      %v248 = vsel %vm226, %v222, 0.0
      %249 = vadd.xlane.f32.xlu0 %v248
      %v250 = vpop.xlane.xlu0 %249
      %v251 = vadd.f32 %v229, %v232
      %v252 = vadd.f32 %v251, %v235
      %v253 = vadd.f32 %v252, %v238
      %v254 = vadd.f32 %v253, %v241
      %v255 = vadd.f32 %v254, %v244
      %v256 = vadd.f32 %v255, %v247
      %v257 = vadd.f32 %v256, %v250
      %v258 = vrot.slane %v257, 4
      %v259 = vadd.f32 %v257, %v258
      %v260 = vrot.slane %v259, 2
      %v261 = vadd.f32 %v259, %v260
      %v262 = vrot.slane %v261, 1
      %v263 = vadd.f32 %v261, %v262
      %v264 = vmul.f32 %v215, %v215
      %v265 = vmul.f32 %v216, %v216
      %v266 = vmul.f32 %v217, %v217
      %v267 = vmul.f32 %v218, %v218
      %v268 = vmul.f32 %v219, %v219
      %v269 = vmul.f32 %v220, %v220
      %v270 = vmul.f32 %v221, %v221
      %v271 = vmul.f32 %v222, %v222
      %v272 = vsel %vm226, %v264, 0.0
      %273 = vadd.xlane.f32.xlu0 %v272
      %v274 = vpop.xlane.xlu0 %273
      %v275 = vsel %vm226, %v265, 0.0
      %276 = vadd.xlane.f32.xlu0 %v275
      %v277 = vpop.xlane.xlu0 %276
      %v278 = vsel %vm226, %v266, 0.0
      %279 = vadd.xlane.f32.xlu0 %v278
      %v280 = vpop.xlane.xlu0 %279
      %v281 = vsel %vm226, %v267, 0.0
      %282 = vadd.xlane.f32.xlu0 %v281
      %v283 = vpop.xlane.xlu0 %282
      %v284 = vsel %vm226, %v268, 0.0
      %285 = vadd.xlane.f32.xlu0 %v284
      %v286 = vpop.xlane.xlu0 %285
      %v287 = vsel %vm226, %v269, 0.0
      %288 = vadd.xlane.f32.xlu0 %v287
      %v289 = vpop.xlane.xlu0 %288
      %v290 = vsel %vm226, %v270, 0.0
      %291 = vadd.xlane.f32.xlu0 %v290
      %v292 = vpop.xlane.xlu0 %291
      %v293 = vsel %vm226, %v271, 0.0
      %294 = vadd.xlane.f32.xlu0 %v293
      %v295 = vpop.xlane.xlu0 %294
      %v296 = vadd.f32 %v274, %v277
      %v297 = vadd.f32 %v296, %v280
      %v298 = vadd.f32 %v297, %v283
      %v299 = vadd.f32 %v298, %v286
      %v300 = vadd.f32 %v299, %v289
      %v301 = vadd.f32 %v300, %v292
      %v302 = vadd.f32 %v301, %v295
      %v303 = vrot.slane %v302, 4
      %v304 = vadd.f32 %v302, %v303
      %v305 = vrot.slane %v304, 2
      %v306 = vadd.f32 %v304, %v305
      %v307 = vrot.slane %v306, 1
      %v308 = vadd.f32 %v306, %v307
      %v309 = vstv %s225
      %v310 = vrcp.pop %v309
      %v311 = vmul.f32 %v309, %v310
      %v312 = vsub.f32 1.0, %v311
      %v313 = vmul.f32 %v310, %v312
      %v314 = vadd.f32 %v310, %v313
      %vm315 = vweird.f32 %v309
      %vm316 = vweird.f32 %v310
      %vm317 = vmor %vm315, %vm316
      %v318 = vsel %vm317, %v310, %v314
      %v319 = vand.u32 2147483647, %v309
      %vm320 = vcmp.eq.f32.partialorder %v319, 8.507059e+37
      %v321 = vand.u32 %v309, 2147483648
      %v322 = vor.u32 1.1754944e-38, %v321
      %v323 = vsel %vm320, %v322, %v318
      %v324 = vmul.f32 %v263, %v323
      %v325 = vmul.f32 %v308, %v323
      %v326 = vmul.f32 %v324, %v324
      %v327 = vsub.f32 %v325, %v326
      %v328 = vadd.f32 %v327, 1e-05
      %v329 = vrsqrt.pop %v328
      %v330 = vmul.f32 %v329, %v328
      %v331 = vmul.f32 %v330, %v329
      %v332 = vmul.f32 0.5, %v331
      %v333 = vsub.f32 1.5, %v332
      %v334 = vmul.f32 %v329, %v333
      %vm335 = vweird.f32 %v328
      %vm336 = vweird.f32 %v329
      %vm337 = vmor %vm335, %vm336
      %v338 = vsel %vm337, %v329, %v334
      %v339 = vsub.f32 %v215, %v324
      %v340 = vsub.f32 %v216, %v324
      %v341 = vsub.f32 %v217, %v324
      %v342 = vsub.f32 %v218, %v324
      %v343 = vsub.f32 %v219, %v324
      %v344 = vsub.f32 %v220, %v324
      %v345 = vsub.f32 %v221, %v324
      %v346 = vsub.f32 %v222, %v324
      %v347 = vmul.f32 %v339, %v338
      %v348 = vmul.f32 %v340, %v338
      %v349 = vmul.f32 %v341, %v338
      %v350 = vmul.f32 %v342, %v338
      %v351 = vmul.f32 %v343, %v338
      %v352 = vmul.f32 %v344, %v338
      %v353 = vmul.f32 %v345, %v338
      %v354 = vmul.f32 %v346, %v338
      %v355 = vld [vmem:[%s3] sm:$0xff]
      %v356 = vld [vmem:[%s3 + $0x8] sm:$0xff]
      %v357 = vld [vmem:[%s3 + $0x10] sm:$0xff]
      %v358 = vld [vmem:[%s3 + $0x18] sm:$0xff]
      %v359 = vld [vmem:[%s3 + $0x20] sm:$0xff]
      %v360 = vld [vmem:[%s3 + $0x28] sm:$0xff]
      %v361 = vld [vmem:[%s3 + $0x30] sm:$0xff]
      %v362 = vld [vmem:[%s3 + $0x38] sm:$0xff]
      %v364 = vsel %vm226, %v347, 0
      %v367 = vsel %vm226, %v348, 0
      %v370 = vsel %vm226, %v349, 0
      %v373 = vsel %vm226, %v350, 0
      %v376 = vsel %vm226, %v351, 0
      %v379 = vsel %vm226, %v352, 0
      %v382 = vsel %vm226, %v353, 0
      %v385 = vsel %vm226, %v354, 0
      %387 = vmatpush.msra.mxu0 0.0
      %388 = vmatpush.msra.mxu0 0.0
      %389 = vmatpush.msra.mxu0 0.0
      %390 = vmatpush.msra.mxu0 0.0
      %391 = vmatpush.msra.mxu0 0.0
      %392 = vmatpush.msra.mxu0 0.0
      %393 = vmatpush.msra.mxu0 0.0
      %394 = vmatpush.msra.mxu0 0.0
      %395 = vmatpush.msra.mxu0 0.0
      %396 = vmatpush.msra.mxu0 0.0
      %397 = vmatpush.msra.mxu0 0.0
      %398 = vmatpush.msra.mxu0 0.0
      %399 = vmatpush.msra.mxu0 %v361
      %400 = vmatpush.msra.mxu0 %v359
      %401 = vmatpush.msra.mxu0 %v357
      %402 = vmatpush.msra.mxu0 %v355
      %403 = vmatmul.f32.gmra.mxu0 %v364
      %v404 = vpop.f32.mrf.mxu0
      %v405 = vadd.f32 0.0, %v404
      %406 = vmatmul.f32.gmra.mxu0 %v367
      %v407 = vpop.f32.mrf.mxu0
      %v408 = vadd.f32 0.0, %v407
      %409 = vmatmul.f32.gmra.mxu0 %v370
      %v410 = vpop.f32.mrf.mxu0
      %v411 = vadd.f32 0.0, %v410
      %412 = vmatmul.f32.gmra.mxu0 %v373
      %v413 = vpop.f32.mrf.mxu0
      %v414 = vadd.f32 0.0, %v413
      %415 = vmatmul.f32.gmra.mxu0 %v376
      %v416 = vpop.f32.mrf.mxu0
      %v417 = vadd.f32 0.0, %v416
      %418 = vmatmul.f32.gmra.mxu0 %v379
      %v419 = vpop.f32.mrf.mxu0
      %v420 = vadd.f32 0.0, %v419
      %421 = vmatmul.f32.gmra.mxu0 %v382
      %v422 = vpop.f32.mrf.mxu0
      %v423 = vadd.f32 0.0, %v422
      %424 = vmatmul.f32.gmra.mxu0 %v385
      %v425 = vpop.f32.mrf.mxu0
      %v426 = vadd.f32 0.0, %v425
      %427 = vdwg.mxu0
      %428 = vmatpush.msra.mxu0 0.0
      %429 = vmatpush.msra.mxu0 0.0
      %430 = vmatpush.msra.mxu0 0.0
      %431 = vmatpush.msra.mxu0 0.0
      %432 = vmatpush.msra.mxu0 0.0
      %433 = vmatpush.msra.mxu0 0.0
      %434 = vmatpush.msra.mxu0 0.0
      %435 = vmatpush.msra.mxu0 0.0
      %436 = vmatpush.msra.mxu0 0.0
      %437 = vmatpush.msra.mxu0 0.0
      %438 = vmatpush.msra.mxu0 0.0
      %439 = vmatpush.msra.mxu0 0.0
      %440 = vmatpush.msra.mxu0 %v362
      %441 = vmatpush.msra.mxu0 %v360
      %442 = vmatpush.msra.mxu0 %v358
      %443 = vmatpush.msra.mxu0 %v356
      %444 = vmatmul.f32.gmra.mxu0 %v364
      %v445 = vpop.f32.mrf.mxu0
      %v446 = vadd.f32 0.0, %v445
      %447 = vmatmul.f32.gmra.mxu0 %v367
      %v448 = vpop.f32.mrf.mxu0
      %v449 = vadd.f32 0.0, %v448
      %450 = vmatmul.f32.gmra.mxu0 %v370
      %v451 = vpop.f32.mrf.mxu0
      %v452 = vadd.f32 0.0, %v451
      %453 = vmatmul.f32.gmra.mxu0 %v373
      %v454 = vpop.f32.mrf.mxu0
      %v455 = vadd.f32 0.0, %v454
      %456 = vmatmul.f32.gmra.mxu0 %v376
      %v457 = vpop.f32.mrf.mxu0
      %v458 = vadd.f32 0.0, %v457
      %459 = vmatmul.f32.gmra.mxu0 %v379
      %v460 = vpop.f32.mrf.mxu0
      %v461 = vadd.f32 0.0, %v460
      %462 = vmatmul.f32.gmra.mxu0 %v382
      %v463 = vpop.f32.mrf.mxu0
      %v464 = vadd.f32 0.0, %v463
      %465 = vmatmul.f32.gmra.mxu0 %v385
      %v466 = vpop.f32.mrf.mxu0
      %v467 = vadd.f32 0.0, %v466
      %468 = vdwg.mxu0
      %v469 = vmul.f32 %v405, %v405
      %v470 = vmul.f32 %v446, %v446
      %v471 = vmul.f32 %v408, %v408
      %v472 = vmul.f32 %v449, %v449
      %v473 = vmul.f32 %v411, %v411
      %v474 = vmul.f32 %v452, %v452
      %v475 = vmul.f32 %v414, %v414
      %v476 = vmul.f32 %v455, %v455
      %v477 = vmul.f32 %v417, %v417
      %v478 = vmul.f32 %v458, %v458
      %v479 = vmul.f32 %v420, %v420
      %v480 = vmul.f32 %v461, %v461
      %v481 = vmul.f32 %v423, %v423
      %v482 = vmul.f32 %v464, %v464
      %v483 = vmul.f32 %v426, %v426
      %v484 = vmul.f32 %v467, %v467
      %v485 = vmul.f32 %v405, %v469
      %v486 = vmul.f32 %v446, %v470
      %v487 = vmul.f32 %v408, %v471
      %v488 = vmul.f32 %v449, %v472
      %v489 = vmul.f32 %v411, %v473
      %v490 = vmul.f32 %v452, %v474
      %v491 = vmul.f32 %v414, %v475
      %v492 = vmul.f32 %v455, %v476
      %v493 = vmul.f32 %v417, %v477
      %v494 = vmul.f32 %v458, %v478
      %v495 = vmul.f32 %v420, %v479
      %v496 = vmul.f32 %v461, %v480
      %v497 = vmul.f32 %v423, %v481
      %v498 = vmul.f32 %v464, %v482
      %v499 = vmul.f32 %v426, %v483
      %v500 = vmul.f32 %v467, %v484
      %v501 = vmul.f32 %v485, 0.044715
      %v502 = vmul.f32 %v486, 0.044715
      %v503 = vmul.f32 %v487, 0.044715
      %v504 = vmul.f32 %v488, 0.044715
      %v505 = vmul.f32 %v489, 0.044715
      %v506 = vmul.f32 %v490, 0.044715
      %v507 = vmul.f32 %v491, 0.044715
      %v508 = vmul.f32 %v492, 0.044715
      %v509 = vmul.f32 %v493, 0.044715
      %v510 = vmul.f32 %v494, 0.044715
      %v511 = vmul.f32 %v495, 0.044715
      %v512 = vmul.f32 %v496, 0.044715
      %v513 = vmul.f32 %v497, 0.044715
      %v514 = vmul.f32 %v498, 0.044715
      %v515 = vmul.f32 %v499, 0.044715
      %v516 = vmul.f32 %v500, 0.044715
      %v517 = vadd.f32 %v405, %v501
      %v518 = vadd.f32 %v446, %v502
      %v519 = vadd.f32 %v408, %v503
      %v520 = vadd.f32 %v449, %v504
      %v521 = vadd.f32 %v411, %v505
      %v522 = vadd.f32 %v452, %v506
      %v523 = vadd.f32 %v414, %v507
      %v524 = vadd.f32 %v455, %v508
      %v525 = vadd.f32 %v417, %v509
      %v526 = vadd.f32 %v458, %v510
      %v527 = vadd.f32 %v420, %v511
      %v528 = vadd.f32 %v461, %v512
      %v529 = vadd.f32 %v423, %v513
      %v530 = vadd.f32 %v464, %v514
      %v531 = vadd.f32 %v426, %v515
      %v532 = vadd.f32 %v467, %v516
      %v533 = vmul.f32 %v517, 0.7978846
      %v534 = vmul.f32 %v518, 0.7978846
      %v535 = vmul.f32 %v519, 0.7978846
      %v536 = vmul.f32 %v520, 0.7978846
      %v537 = vmul.f32 %v521, 0.7978846
      %v538 = vmul.f32 %v522, 0.7978846
      %v539 = vmul.f32 %v523, 0.7978846
      %v540 = vmul.f32 %v524, 0.7978846
      %v541 = vmul.f32 %v525, 0.7978846
      %v542 = vmul.f32 %v526, 0.7978846
      %v543 = vmul.f32 %v527, 0.7978846
      %v544 = vmul.f32 %v528, 0.7978846
      %v545 = vmul.f32 %v529, 0.7978846
      %v546 = vmul.f32 %v530, 0.7978846
      %v547 = vmul.f32 %v531, 0.7978846
      %v548 = vmul.f32 %v532, 0.7978846
      %v549 = vtanh.pop %v533
      %v550 = vtanh.pop %v534
      %v551 = vtanh.pop %v535
      %v552 = vtanh.pop %v536
      %v553 = vtanh.pop %v537
      %v554 = vtanh.pop %v538
      %v555 = vtanh.pop %v539
      %v556 = vtanh.pop %v540
      %v557 = vtanh.pop %v541
      %v558 = vtanh.pop %v542
      %v559 = vtanh.pop %v543
      %v560 = vtanh.pop %v544
      %v561 = vtanh.pop %v545
      %v562 = vtanh.pop %v546
      %v563 = vtanh.pop %v547
      %v564 = vtanh.pop %v548
      %v565 = vadd.f32 %v549, 1.0
      %v566 = vadd.f32 %v550, 1.0
      %v567 = vadd.f32 %v551, 1.0
      %v568 = vadd.f32 %v552, 1.0
      %v569 = vadd.f32 %v553, 1.0
      %v570 = vadd.f32 %v554, 1.0
      %v571 = vadd.f32 %v555, 1.0
      %v572 = vadd.f32 %v556, 1.0
      %v573 = vadd.f32 %v557, 1.0
      %v574 = vadd.f32 %v558, 1.0
      %v575 = vadd.f32 %v559, 1.0
      %v576 = vadd.f32 %v560, 1.0
      %v577 = vadd.f32 %v561, 1.0
      %v578 = vadd.f32 %v562, 1.0
      %v579 = vadd.f32 %v563, 1.0
      %v580 = vadd.f32 %v564, 1.0
      %v581 = vmul.f32 %v565, 0.5
      %v582 = vmul.f32 %v566, 0.5
      %v583 = vmul.f32 %v567, 0.5
      %v584 = vmul.f32 %v568, 0.5
      %v585 = vmul.f32 %v569, 0.5
      %v586 = vmul.f32 %v570, 0.5
      %v587 = vmul.f32 %v571, 0.5
      %v588 = vmul.f32 %v572, 0.5
      %v589 = vmul.f32 %v573, 0.5
      %v590 = vmul.f32 %v574, 0.5
      %v591 = vmul.f32 %v575, 0.5
      %v592 = vmul.f32 %v576, 0.5
      %v593 = vmul.f32 %v577, 0.5
      %v594 = vmul.f32 %v578, 0.5
      %v595 = vmul.f32 %v579, 0.5
      %v596 = vmul.f32 %v580, 0.5
      %v597 = vmul.f32 %v405, %v581
      %v598 = vmul.f32 %v446, %v582
      %v599 = vmul.f32 %v408, %v583
      %v600 = vmul.f32 %v449, %v584
      %v601 = vmul.f32 %v411, %v585
      %v602 = vmul.f32 %v452, %v586
      %v603 = vmul.f32 %v414, %v587
      %v604 = vmul.f32 %v455, %v588
      %v605 = vmul.f32 %v417, %v589
      %v606 = vmul.f32 %v458, %v590
      %v607 = vmul.f32 %v420, %v591
      %v608 = vmul.f32 %v461, %v592
      %v609 = vmul.f32 %v423, %v593
      %v610 = vmul.f32 %v464, %v594
      %v611 = vmul.f32 %v426, %v595
      %v612 = vmul.f32 %v467, %v596
      %v613 = vld [vmem:[%s4] sm:$0xff]
      %v614 = vld [vmem:[%s4 + $0x8] sm:$0xff]
      %v615 = vld [vmem:[%s4 + $0x10] sm:$0xff]
      %v616 = vld [vmem:[%s4 + $0x18] sm:$0xff]
      %v617 = vld [vmem:[%s4 + $0x20] sm:$0xff]
      %v618 = vld [vmem:[%s4 + $0x28] sm:$0xff]
      %v619 = vld [vmem:[%s4 + $0x30] sm:$0xff]
      %v620 = vld [vmem:[%s4 + $0x38] sm:$0xff]
      %v621 = vld [vmem:[%s4 + $0x40] sm:$0xff]
      %v622 = vld [vmem:[%s4 + $0x48] sm:$0xff]
      %v623 = vld [vmem:[%s4 + $0x50] sm:$0xff]
      %v624 = vld [vmem:[%s4 + $0x58] sm:$0xff]
      %v625 = vld [vmem:[%s4 + $0x60] sm:$0xff]
      %v626 = vld [vmem:[%s4 + $0x68] sm:$0xff]
      %v627 = vld [vmem:[%s4 + $0x70] sm:$0xff]
      %v628 = vld [vmem:[%s4 + $0x78] sm:$0xff]
      %v629 = vld [vmem:[%s4 + $0x80] sm:$0xff]
      %v630 = vld [vmem:[%s4 + $0x88] sm:$0xff]
      %v631 = vld [vmem:[%s4 + $0x90] sm:$0xff]
      %v632 = vld [vmem:[%s4 + $0x98] sm:$0xff]
      %v633 = vld [vmem:[%s4 + $0xa0] sm:$0xff]
      %v634 = vld [vmem:[%s4 + $0xa8] sm:$0xff]
      %v635 = vld [vmem:[%s4 + $0xb0] sm:$0xff]
      %v636 = vld [vmem:[%s4 + $0xb8] sm:$0xff]
      %v637 = vld [vmem:[%s4 + $0xc0] sm:$0xff]
      %v638 = vld [vmem:[%s4 + $0xc8] sm:$0xff]
      %v639 = vld [vmem:[%s4 + $0xd0] sm:$0xff]
      %v640 = vld [vmem:[%s4 + $0xd8] sm:$0xff]
      %v641 = vld [vmem:[%s4 + $0xe0] sm:$0xff]
      %v642 = vld [vmem:[%s4 + $0xe8] sm:$0xff]
      %v643 = vld [vmem:[%s4 + $0xf0] sm:$0xff]
      %v644 = vld [vmem:[%s4 + $0xf8] sm:$0xff]
      %v645 = vld [vmem:[%s5] sm:$0x1]
      %v647 = vperm.slane %v645, 0
      %649 = vmatpush.msra.mxu0 %v628
      %650 = vmatpush.msra.mxu0 %v627
      %651 = vmatpush.msra.mxu0 %v626
      %652 = vmatpush.msra.mxu0 %v625
      %653 = vmatpush.msra.mxu0 %v624
      %654 = vmatpush.msra.mxu0 %v623
      %655 = vmatpush.msra.mxu0 %v622
      %656 = vmatpush.msra.mxu0 %v621
      %657 = vmatpush.msra.mxu0 %v620
      %658 = vmatpush.msra.mxu0 %v619
      %659 = vmatpush.msra.mxu0 %v618
      %660 = vmatpush.msra.mxu0 %v617
      %661 = vmatpush.msra.mxu0 %v616
      %662 = vmatpush.msra.mxu0 %v615
      %663 = vmatpush.msra.mxu0 %v614
      %664 = vmatpush.msra.mxu0 %v613
      %665 = vmatmul.f32.gmra.mxu0 %v597
      %v666 = vpop.f32.mrf.mxu0
      %v667 = vadd.f32 %v647, %v666
      %668 = vmatmul.f32.gmra.mxu0 %v599
      %v669 = vpop.f32.mrf.mxu0
      %v670 = vadd.f32 %v647, %v669
      %671 = vmatmul.f32.gmra.mxu0 %v601
      %v672 = vpop.f32.mrf.mxu0
      %v673 = vadd.f32 %v647, %v672
      %674 = vmatmul.f32.gmra.mxu0 %v603
      %v675 = vpop.f32.mrf.mxu0
      %v676 = vadd.f32 %v647, %v675
      %677 = vmatmul.f32.gmra.mxu0 %v605
      %v678 = vpop.f32.mrf.mxu0
      %v679 = vadd.f32 %v647, %v678
      %680 = vmatmul.f32.gmra.mxu0 %v607
      %v681 = vpop.f32.mrf.mxu0
      %v682 = vadd.f32 %v647, %v681
      %683 = vmatmul.f32.gmra.mxu0 %v609
      %v684 = vpop.f32.mrf.mxu0
      %v685 = vadd.f32 %v647, %v684
      %686 = vmatmul.f32.gmra.mxu0 %v611
      %v687 = vpop.f32.mrf.mxu0
      %v688 = vadd.f32 %v647, %v687
      %689 = vdwg.mxu0
      %690 = vmatpush.msra.mxu0 %v644
      %691 = vmatpush.msra.mxu0 %v643
      %692 = vmatpush.msra.mxu0 %v642
      %693 = vmatpush.msra.mxu0 %v641
      %694 = vmatpush.msra.mxu0 %v640
      %695 = vmatpush.msra.mxu0 %v639
      %696 = vmatpush.msra.mxu0 %v638
      %697 = vmatpush.msra.mxu0 %v637
      %698 = vmatpush.msra.mxu0 %v636
      %699 = vmatpush.msra.mxu0 %v635
      %700 = vmatpush.msra.mxu0 %v634
      %701 = vmatpush.msra.mxu0 %v633
      %702 = vmatpush.msra.mxu0 %v632
      %703 = vmatpush.msra.mxu0 %v631
      %704 = vmatpush.msra.mxu0 %v630
      %705 = vmatpush.msra.mxu0 %v629
      %706 = vmatmul.f32.gmra.mxu0 %v598
      %v707 = vpop.f32.mrf.mxu0
      %v708 = vadd.f32 %v667, %v707
      %709 = vmatmul.f32.gmra.mxu0 %v600
      %v710 = vpop.f32.mrf.mxu0
      %v711 = vadd.f32 %v670, %v710
      %712 = vmatmul.f32.gmra.mxu0 %v602
      %v713 = vpop.f32.mrf.mxu0
      %v714 = vadd.f32 %v673, %v713
      %715 = vmatmul.f32.gmra.mxu0 %v604
      %v716 = vpop.f32.mrf.mxu0
      %v717 = vadd.f32 %v676, %v716
      %718 = vmatmul.f32.gmra.mxu0 %v606
      %v719 = vpop.f32.mrf.mxu0
      %v720 = vadd.f32 %v679, %v719
      %721 = vmatmul.f32.gmra.mxu0 %v608
      %v722 = vpop.f32.mrf.mxu0
      %v723 = vadd.f32 %v682, %v722
      %724 = vmatmul.f32.gmra.mxu0 %v610
      %v725 = vpop.f32.mrf.mxu0
      %v726 = vadd.f32 %v685, %v725
      %727 = vmatmul.f32.gmra.mxu0 %v612
      %v728 = vpop.f32.mrf.mxu0
      %v729 = vadd.f32 %v688, %v728
      %730 = vdwg.mxu0
      %v731 = vlaneseq
      %v732 = vshrl.u32 %v731, 7
      %v733 = vadd.s32 %v732, 8
      %v734 = vadd.s32 %v732, 16
      %v735 = vadd.s32 %v732, 24
      %v736 = vadd.s32 %v732, 32
      %v737 = vadd.s32 %v732, 40
      %v738 = vadd.s32 %v732, 48
      %v739 = vadd.s32 %v732, 56
      %v740 = vlaneseq
      %v741 = vand.u32 %v740, 127
      %v742 = vmul.u32 %v732, 128
      %v743 = vmul.u32 %v733, 128
      %v744 = vmul.u32 %v734, 128
      %v745 = vmul.u32 %v735, 128
      %v746 = vmul.u32 %v736, 128
      %v747 = vmul.u32 %v737, 128
      %v748 = vmul.u32 %v738, 128
      %v749 = vmul.u32 %v739, 128
      %v750 = vadd.s32 %v742, %v741
      %v751 = vadd.s32 %v743, %v741
      %v752 = vadd.s32 %v744, %v741
      %v753 = vadd.s32 %v745, %v741
      %v754 = vadd.s32 %v746, %v741
      %v755 = vadd.s32 %v747, %v741
      %v756 = vadd.s32 %v748, %v741
      %v757 = vadd.s32 %v749, %v741
      %s758 = smul.u32 %s213, 64
      %v759 = vstv %s758
      %vm760 = vcmp.lt.s32.totalorder %v750, %v759
      %vm761 = vcmp.lt.s32.totalorder %v751, %v759
      %vm762 = vcmp.lt.s32.totalorder %v752, %v759
      %vm763 = vcmp.lt.s32.totalorder %v753, %v759
      %vm764 = vcmp.lt.s32.totalorder %v754, %v759
      %vm765 = vcmp.lt.s32.totalorder %v755, %v759
      %vm766 = vcmp.lt.s32.totalorder %v756, %v759
      %vm767 = vcmp.lt.s32.totalorder %v757, %v759
      %v768 = vsel %vm760, 1, 0
      %v769 = vsel %vm761, 1, 0
      %v770 = vsel %vm762, 1, 0
      %v771 = vsel %vm763, 1, 0
      %v772 = vsel %vm764, 1, 0
      %v773 = vsel %vm765, 1, 0
      %v774 = vsel %vm766, 1, 0
      %v775 = vsel %vm767, 1, 0
      %v776 = vcvt.s32.f32 %v768
      %v777 = vcvt.s32.f32 %v769
      %v778 = vcvt.s32.f32 %v770
      %v779 = vcvt.s32.f32 %v771
      %v780 = vcvt.s32.f32 %v772
      %v781 = vcvt.s32.f32 %v773
      %v782 = vcvt.s32.f32 %v774
      %v783 = vcvt.s32.f32 %v775
      %v784 = vmul.f32 %v708, %v776
      %v785 = vmul.f32 %v711, %v777
      %v786 = vmul.f32 %v714, %v778
      %v787 = vmul.f32 %v717, %v779
      %v788 = vmul.f32 %v720, %v780
      %v789 = vmul.f32 %v723, %v781
      %v790 = vmul.f32 %v726, %v782
      %v791 = vmul.f32 %v729, %v783
      %792 = vst [vmem:[%s212] sm:$0xff] %v784
      %793 = vst [vmem:[%s212 + $0x8] sm:$0xff] %v785
      %794 = vst [vmem:[%s212 + $0x10] sm:$0xff] %v786
      %795 = vst [vmem:[%s212 + $0x18] sm:$0xff] %v787
      %796 = vst [vmem:[%s212 + $0x20] sm:$0xff] %v788
      %797 = vst [vmem:[%s212 + $0x28] sm:$0xff] %v789
      %798 = vst [vmem:[%s212 + $0x30] sm:$0xff] %v790
      %799 = vst [vmem:[%s212 + $0x38] sm:$0xff] %v791
      %p800 = scmp.lt.s32.totalorder %s30, 1
      %s801 = scalar_select %p800, %s30, 1
      %s802 = smul.addr %s801, 8
      %s803 = smul.addr %s802, 8
      %s804 = scalar_lea.vmem %s6, %s803
      // Predicated region
      $region37: #{wrapped_upstream_forward.1} parent=35 // pred_check
        %p805 = pneg %p137
      $region38: #{wrapped_upstream_forward.1} parent=35 // pred_check_branch
        %807 = sbr.rel (%p805) target = $region40
      $region39: #{wrapped_upstream_forward.1} parent=35 // pred_region
        _
      $region40: #{wrapped_upstream_forward.1} parent=35 // pred_fallthru
        _
    $region36: #{wrapped_upstream_forward.1} parent=5 // pred_fallthru
      _
    %p808 = scmp.le.s32.totalorder 2, %s25
    // Predicated region
    $region41: #{wrapped_upstream_forward.1} parent=5 // pred_check
      %p809 = pneg %p808
    $region42: #{wrapped_upstream_forward.1} parent=5 // pred_check_branch
      %811 = sbr.rel (%p809) target = $region44
    $region43: #{wrapped_upstream_forward.1} parent=5 // pred_region
      %s812 = ssub.s32 %s25, 2
      // Predicated region
      $region45: #{wrapped_upstream_forward.1} parent=43 // pred_check
        %p813 = pneg %p143
      $region46: #{wrapped_upstream_forward.1} parent=43 // pred_check_branch
        %815 = sbr.rel (%p813) target = $region48
      $region47: #{wrapped_upstream_forward.1} parent=43 // pred_region
        %p816 = scmp.lt.s32.totalorder %s31, 1
        %s817 = scalar_select %p816, %s31, 1
        %s818 = smul.addr %s817, 8
        %s819 = smul.addr %s818, 8
        %s820 = scalar_lea.vmem %s6, %s819
      $region48: #{wrapped_upstream_forward.1} parent=43 // pred_fallthru
        _
    $region44: #{wrapped_upstream_forward.1} parent=5 // pred_fallthru
      _
  $region6: #{wrapped_upstream_forward.1} parent=0 // loop_footer
    %s29 = sadd.s32 1, %s25
  $region7: #{wrapped_upstream_forward.1} parent=0 // loop_footer_branch
    %24 = sbr.rel target = $region3
  $region8: #{wrapped_upstream_forward.1} parent=0 // loop_exit
    _

</llo_original>
